<compile_context>
chip_gen: v7x
topology: tpu7x:2x2x1
jax: 0.10.0
libtpu: 0.0.40
codegen_flags: <defaults>
</compile_context>

<pallas_src>
import functools

import jax
import jax.numpy as jnp
from jax import lax
from jax.experimental import pallas as pl
from jax.experimental.pallas import tpu as pltpu


def _pick_tile(n):
    """Row/col tile for the (N, N) adjacency. Keeps VMEM use modest (v7x = 64 MiB)."""
    if n <= 512:
        return n
    for t in (512, 256, 128):
        if n % t == 0:
            return t
    return n  # fallback: whole array (only hit for awkward large N)


# ---------------------------------------------------------------------------
# Kernel 1: d = rsqrt(1 + A.sum(axis=1))      (one streaming pass over A)
# ---------------------------------------------------------------------------
def _deg_rsqrt_kernel(a_ref, d_ref, acc_ref):
    k = pl.program_id(1)

    @pl.when(k == 0)
    def _():
        # the +I term of (I + A) contributes exactly 1 to every row degree
        acc_ref[...] = jnp.ones_like(acc_ref)

    acc_ref[...] += jnp.sum(a_ref[...], axis=1, keepdims=True)

    @pl.when(k == pl.num_programs(1) - 1)
    def _():
        # deg >= 1 always, so rsqrt never sees 0 (the torch inf-guard is dead code here)
        d_ref[...] = lax.rsqrt(acc_ref[...])


def degree_rsqrt(a):
    n = a.shape[0]
    t = _pick_tile(n)
    return pl.pallas_call(
        _deg_rsqrt_kernel,
        out_shape=jax.ShapeDtypeStruct((n, 1), jnp.float32),
        grid_spec=pltpu.PrefetchScalarGridSpec(
            num_scalar_prefetch=0,
            grid=(n // t, n // t),
            in_specs=[pl.BlockSpec((t, t), lambda i, k: (i, k))],
            out_specs=pl.BlockSpec((t, 1), lambda i, k: (i, 0)),
            scratch_shapes=[pltpu.VMEM((t, 1), jnp.float32)],
        ),
        compiler_params=pltpu.CompilerParams(
            dimension_semantics=("parallel", "arbitrary")),
    )(a)


# ---------------------------------------------------------------------------
# Kernel 2: fused layer 1 + pre-transform for layer 2.
#   M[i,:] = (d_i * relu(d_i * ((I + A) (d * X))[i,:] @ W1 + b1)) @ W2_pad
# One streaming pass over A; h never leaves vregs, adj_norm never exists.
# ---------------------------------------------------------------------------
def _layer1_to_m_kernel(a_ref, x_i_ref, x_k_ref, d_i_ref, d_k_ref,
                        w1_ref, b1_ref, w2_ref, m_ref, acc_ref):
    k = pl.program_id(1)

    @pl.when(k == 0)
    def _():
        # identity term of (I + A): this row tile's own (column-scaled) features
        acc_ref[...] = d_i_ref[...] * x_i_ref[...]

    # A[i-tile, k-tile] @ (d * X)[k-tile]   -- N^2 matmul carries only F_in columns
    xs_k = d_k_ref[...] * x_k_ref[...]
    acc_ref[...] += jnp.dot(a_ref[...], xs_k, preferred_element_type=jnp.float32)

    @pl.when(k == pl.num_programs(1) - 1)
    def _():
        d_i = d_i_ref[...]
        h = jnp.dot(d_i * acc_ref[...], w1_ref[...],
                    preferred_element_type=jnp.float32) + b1_ref[...]
        h = jnp.maximum(h, 0.0)                                   # relu
        # pre-apply layer-2 row scaling + W2 so the next N^2 pass carries C_pad columns
        m_ref[...] = jnp.dot(d_i * h, w2_ref[...],
                             preferred_element_type=jnp.float32).astype(m_ref.dtype)


def layer1_to_m(a, x, d, w1, b1, w2_pad):
    n, f_in = x.shape
    h_feats = w1.shape[1]
    c_pad = w2_pad.shape[1]
    t = _pick_tile(n)
    return pl.pallas_call(
        _layer1_to_m_kernel,
        out_shape=jax.ShapeDtypeStruct((n, c_pad), jnp.float32),
        grid_spec=pltpu.PrefetchScalarGridSpec(
            num_scalar_prefetch=0,
            grid=(n // t, n // t),
            in_specs=[
                pl.BlockSpec((t, t), lambda i, k: (i, k)),          # A
                pl.BlockSpec((t, f_in), lambda i, k: (i, 0)),       # X (row tile)
                pl.BlockSpec((t, f_in), lambda i, k: (k, 0)),       # X (reduction tile)
                pl.BlockSpec((t, 1), lambda i, k: (i, 0)),          # d (row tile)
                pl.BlockSpec((t, 1), lambda i, k: (k, 0)),          # d (reduction tile)
                pl.BlockSpec((f_in, h_feats), lambda i, k: (0, 0)),  # W1
                pl.BlockSpec((1, h_feats), lambda i, k: (0, 0)),     # b1
                pl.BlockSpec((h_feats, c_pad), lambda i, k: (0, 0)),  # W2 (lane-padded)
            ],
            out_specs=pl.BlockSpec((t, c_pad), lambda i, k: (i, 0)),
            scratch_shapes=[pltpu.VMEM((t, f_in), jnp.float32)],
        ),
        compiler_params=pltpu.CompilerParams(
            dimension_semantics=("parallel", "arbitrary")),
    )(a, x, x, d, d, w1, b1, w2_pad)


# ---------------------------------------------------------------------------
# Kernel 3: layer-2 aggregation with the mean-node readout fused in.
#   out = (1/N) * sum_i d_i * ((I + A) @ M)[i,:] + b2_pad
# One streaming pass over A; no (N, C) intermediate is written to HBM.
# ---------------------------------------------------------------------------
def _layer2_readout_kernel(a_ref, m_i_ref, m_k_ref, d_i_ref, b2_ref,
                           out_ref, acc_ref, *, inv_n):
    i = pl.program_id(0)
    k = pl.program_id(1)
    ni = pl.num_programs(0)
    nk = pl.num_programs(1)

    @pl.when(jnp.logical_and(i == 0, k == 0))
    def _():
        out_ref[...] = jnp.zeros_like(out_ref)

    @pl.when(k == 0)
    def _():
        acc_ref[...] = m_i_ref[...]            # identity term of (I + A)

    acc_ref[...] += jnp.dot(a_ref[...], m_k_ref[...],
                            preferred_element_type=jnp.float32)

    @pl.when(k == nk - 1)
    def _():
        # finished rows of y2 for this row tile -> accumulate their node-sum
        out_ref[...] += jnp.sum(d_i_ref[...] * acc_ref[...], axis=0, keepdims=True)

    @pl.when(jnp.logical_and(i == ni - 1, k == nk - 1))
    def _():
        out_ref[...] = out_ref[...] * inv_n + b2_ref[...]


def layer2_readout(a, m, d, b2_pad):
    n = a.shape[0]
    c_pad = m.shape[1]
    t = _pick_tile(n)
    kernel = functools.partial(_layer2_readout_kernel, inv_n=1.0 / n)
    return pl.pallas_call(
        kernel,
        out_shape=jax.ShapeDtypeStruct((1, c_pad), jnp.float32),
        grid_spec=pltpu.PrefetchScalarGridSpec(
            num_scalar_prefetch=0,
            grid=(n // t, n // t),
            in_specs=[
                pl.BlockSpec((t, t), lambda i, k: (i, k)),        # A
                pl.BlockSpec((t, c_pad), lambda i, k: (i, 0)),    # M (row tile)
                pl.BlockSpec((t, c_pad), lambda i, k: (k, 0)),    # M (reduction tile)
                pl.BlockSpec((t, 1), lambda i, k: (i, 0)),        # d (row tile)
                pl.BlockSpec((1, c_pad), lambda i, k: (0, 0)),    # b2 (lane-padded)
            ],
            out_specs=pl.BlockSpec((1, c_pad), lambda i, k: (0, 0)),
            scratch_shapes=[pltpu.VMEM((t, c_pad), jnp.float32)],
        ),
        # output accumulates across both grid axes -> both must be sequential
        compiler_params=pltpu.CompilerParams(
            dimension_semantics=("arbitrary", "arbitrary")),
    )(a, m, m, d, b2_pad)


# ---------------------------------------------------------------------------
# Full SparseGCN forward
# ---------------------------------------------------------------------------
def sparse_gcn_forward(adj, features, params):
    num_classes = params["w2"].shape[1]
    c_pad = max(128, ((num_classes + 127) // 128) * 128)  # lane-dense class dim

    # zero-pad the class dimension once (cheap, O(H*C)); padded columns stay exactly 0.
    w2_pad = jnp.pad(params["w2"], ((0, 0), (0, c_pad - num_classes)))
    b2_pad = jnp.pad(params["b2"], ((0, 0), (0, c_pad - num_classes)))

    d = degree_rsqrt(adj)                                              # (N, 1)
    m = layer1_to_m(adj, features, d, params["w1"], params["b1"], w2_pad)  # (N, c_pad)
    out_pad = layer2_readout(adj, m, d, b2_pad)                        # (1, c_pad)
    return out_pad[:, :num_classes]


def init_params(key, in_feats, h_feats, num_classes):
    """Deterministic init mimicking torch.nn.Linear default (uniform +-1/sqrt(fan_in))."""
    k1, k2, k3, k4 = jax.random.split(key, 4)
    lim1 = 1.0 / jnp.sqrt(in_feats)
    lim2 = 1.0 / jnp.sqrt(h_feats)
    return {
        "w1": jax.random.uniform(k1, (in_feats, h_feats), jnp.float32, -lim1, lim1),
        "b1": jax.random.uniform(k2, (1, h_feats), jnp.float32, -lim1, lim1),
        "w2": jax.random.uniform(k3, (h_feats, num_classes), jnp.float32, -lim2, lim2),
        "b2": jax.random.uniform(k4, (1, num_classes), jnp.float32, -lim2, lim2),
    }


if __name__ == "__main__":
    # Small synthetic graph: N nodes, dense 0/1 adjacency (symmetric), random features.
    # TODO(synk): DGL graph object / torch.sparse adjacency has no Pallas equivalent;
    #             a dense (N, N) adjacency stands in for it.
    N, IN_FEATS, H_FEATS, NUM_CLASSES = 16, 8, 32, 4

    key = jax.random.PRNGKey(0)
    k_adj, k_feat, k_params = jax.random.split(key, 3)

    # random undirected graph adjacency (no self loops; forward adds I implicitly)
    a_rand = jax.random.bernoulli(k_adj, 0.25, (N, N)).astype(jnp.float32)
    adj = jnp.triu(a_rand, 1)
    adj = adj + adj.T

    features = jax.random.normal(k_feat, (N, IN_FEATS), jnp.float32)
    params = init_params(k_params, IN_FEATS, H_FEATS, NUM_CLASSES)

    out = sparse_gcn_forward(adj, features, params)
    jax.block_until_ready(out)

    # reference check in plain JAX
    adj_i = adj + jnp.eye(N, dtype=jnp.float32)
    deg = adj_i.sum(1)
    d_ref = jnp.where(deg > 0, deg ** -0.5, 0.0)
    adj_n = d_ref[:, None] * adj_i * d_ref[None, :]
    h_ref = jnp.maximum(adj_n @ features @ params["w1"] + params["b1"], 0.0)
    y_ref = adj_n @ h_ref @ params["w2"] + params["b2"]
    ref = jnp.mean(y_ref, axis=0, keepdims=True)

    assert out.shape == (1, NUM_CLASSES)
    assert jnp.allclose(out, ref, atol=1e-4, rtol=1e-4), (out, ref)
    print("KERNEL_OK")
</pallas_src>

<mosaic_0001>
module attributes {stable_mosaic.version = 11 : i64} {
  func.func @_deg_rsqrt_kernel(%arg0: i32, %arg1: i32, %arg2: memref<16x16xf32, #tpu.memory_space<vmem>>, %arg3: memref<16x1xf32, #tpu.memory_space<vmem>>, %arg4: memref<16x1xf32, #tpu.memory_space<vmem>>) attributes {dimension_semantics = [#tpu.dimension_semantics<parallel>, #tpu.dimension_semantics<arbitrary>], iteration_bounds = array<i64: 1, 1>, scalar_prefetch = 0 : i64, scratch_operands = 1 : i64, tpu.core_type = #tpu.core_type<tc>, window_params = [{transform_indices = @transform_0, window_bounds = array<i64: 16, 16>}, {transform_indices = @transform_1, window_bounds = array<i64: 16, 1>}]} {
    %c0_i32 = arith.constant 0 : i32
    %0 = arith.cmpi eq, %arg1, %c0_i32 : i32
    %1 = arith.extui %0 : i1 to i32
    %c0_i32_0 = arith.constant 0 : i32
    %2 = arith.cmpi ne, %1, %c0_i32_0 : i32
    scf.if %2 {
      %cst_8 = arith.constant 1.000000e+00 : f32
      %12 = vector.broadcast %cst_8 : f32 to vector<16x1xf32>
      %c0_9 = arith.constant 0 : index
      %c0_10 = arith.constant 0 : index
      %13 = vector.load %arg4[%c0_9, %c0_10] : memref<16x1xf32, #tpu.memory_space<vmem>>, vector<16x1xf32>
      tpu.vector_store %arg4[%c0_9, %c0_10], %12 {strides = array<i32>} : memref<16x1xf32, #tpu.memory_space<vmem>>, vector<16x1xf32>,
    } else {
    }
    %c0 = arith.constant 0 : index
    %c0_1 = arith.constant 0 : index
    %3 = vector.load %arg4[%c0, %c0_1] : memref<16x1xf32, #tpu.memory_space<vmem>>, vector<16x1xf32>
    %c0_2 = arith.constant 0 : index
    %c0_3 = arith.constant 0 : index
    %4 = vector.load %arg2[%c0_2, %c0_3] : memref<16x16xf32, #tpu.memory_space<vmem>>, vector<16x16xf32>
    %cst = arith.constant dense<0.000000e+00> : vector<16xf32>
    %5 = vector.multi_reduction <add>, %4, %cst [1] : vector<16x16xf32> to vector<16xf32>
    %6 = vector.shape_cast %5 : vector<16xf32> to vector<16x1xf32>
    %7 = arith.addf %3, %6 : vector<16x1xf32>
    %c0_4 = arith.constant 0 : index
    %c0_5 = arith.constant 0 : index
    %8 = vector.load %arg4[%c0_4, %c0_5] : memref<16x1xf32, #tpu.memory_space<vmem>>, vector<16x1xf32>
    tpu.vector_store %arg4[%c0_4, %c0_5], %7 {strides = array<i32>} : memref<16x1xf32, #tpu.memory_space<vmem>>, vector<16x1xf32>,
    %c0_i32_6 = arith.constant 0 : i32
    %9 = arith.cmpi eq, %arg1, %c0_i32_6 : i32
    %10 = arith.extui %9 : i1 to i32
    %c0_i32_7 = arith.constant 0 : i32
    %11 = arith.cmpi ne, %10, %c0_i32_7 : i32
    scf.if %11 {
      %c0_8 = arith.constant 0 : index
      %c0_9 = arith.constant 0 : index
      %12 = vector.load %arg4[%c0_8, %c0_9] : memref<16x1xf32, #tpu.memory_space<vmem>>, vector<16x1xf32>
      %13 = math.rsqrt %12 : vector<16x1xf32>
      %c0_10 = arith.constant 0 : index
      %c0_11 = arith.constant 0 : index
      %14 = vector.load %arg3[%c0_10, %c0_11] : memref<16x1xf32, #tpu.memory_space<vmem>>, vector<16x1xf32>
      tpu.vector_store %arg3[%c0_10, %c0_11], %13 {strides = array<i32>} : memref<16x1xf32, #tpu.memory_space<vmem>>, vector<16x1xf32>,
    } else {
    }
    return
  }
  func.func @transform_0(%arg0: i32, %arg1: i32) -> (i32, i32) {
    %c0_i32 = arith.constant 0 : i32
    return %arg0, %arg1 : i32, i32
  }
  func.func @transform_1(%arg0: i32, %arg1: i32) -> (i32, i32) {
    %c0_i32 = arith.constant 0 : i32
    %c0_i32_0 = arith.constant 0 : i32
    return %arg0, %c0_i32 : i32, i32
  }
}

</mosaic_0001>

<llo_original>
// kernel: tpu_custom_call.1
$region0: #{tpu_custom_call.1}
  #allocation0 [shape = 'u32[]', space=smem, size = 0x4, offset = 0x4, fixed_abs, tag = 'smem constant byte address 0x4 - core index']
  #allocation1 [shape = 'u32[144,128]{1,0:T(1,128)}', space=vmem, size = 0x12000, scoped, tag = 'internal scratch']
  #allocation2 [shape = 'f32[16,1]{1,0:T(8,128)}', space=vmem, size = 0x2000, scoped, tag = 'scratch operand']
  %s0 = inlined_call_operand.hbm [shape: f32[16,16], index: 0, kind: input, shape index: {}]
  %s1 = inlined_call_operand.vmem [shape: f32[16,1], index: 1, kind: output, shape index: {}]
  %s2 = sld [smem:[#allocation0]]
  $region26: #{tpu_custom_call.1} parent=0
    _
  %s4 = ssub.s32 1, %s2
  %s5 = scalar_select 0, %s4, %s2
  $region1: #{tpu_custom_call.1} parent=0
    #allocation3 [shape = 'u8[8192]{0}', space=vmem, size = 0x2000, scoped, tag = 'input window, operand 0, single buffered']
    #allocation4 [shape = 's32[1]{0}', space=sflag, size = 0x4, scoped, tag = 'scoped memory for tpu_custom_call.1']
    %6 = vsyncpa [#allocation4], 0
    // Predicated region
    $region2: #{tpu_custom_call.1} parent=1 // pred_check
      _
    $region3: #{tpu_custom_call.1} parent=1 // pred_check_branch
      %8 = sbr.rel (0) target = $region5
    $region4: #{tpu_custom_call.1} parent=1 // pred_region
      %s10 = ssub.s32 256, 256
      %11 = vsyncadd [#allocation4], %s10
      %s12 = sshll.u32 [#allocation3], 4
      %s13 = int_to_ptr.vmem [resolvable:$true] %s12
      %18 = dma.hbm_to_vmem [thread:$0]  %s0, 256, %s13, [#allocation4], 128, 128, 8
    $region5: #{tpu_custom_call.1} parent=1 // pred_fallthru
      _
    // Predicated region
    $region6: #{tpu_custom_call.1} parent=1 // pred_check
      _
    $region7: #{tpu_custom_call.1} parent=1 // pred_check_branch
      %20 = sbr.rel (0) target = $region9
    $region8: #{tpu_custom_call.1} parent=1 // pred_region
      %21 = dma.done [#allocation4], 256
    $region9: #{tpu_custom_call.1} parent=1 // pred_fallthru
      _
    %p22 = scmp.eq.s32.totalorder 0, 0
    // Predicated region
    $region10: #{tpu_custom_call.1} parent=1 // pred_check
      %p23 = pneg %p22
    $region11: #{tpu_custom_call.1} parent=1 // pred_check_branch
      %25 = sbr.rel (%p23) target = $region13
    $region12: #{tpu_custom_call.1} parent=1 // pred_region
      %vm26 = vcmask 7168
      %27 = vst.msk [vmem:[#allocation2] sm:$0xff] %vm26, 1.0
      %28 = vst.msk [vmem:[#allocation2 + $0x8] sm:$0xff] %vm26, 1.0
    $region13: #{tpu_custom_call.1} parent=1 // pred_fallthru
      _
    %v29 = vld [vmem:[#allocation2] sm:$0xff]
    %v30 = vld [vmem:[#allocation2 + $0x8] sm:$0xff]
    %v31 = vld [vmem:[#allocation3] sm:$0xff]
    %v32 = vld [vmem:[#allocation3 + $0x8] sm:$0xff]
    %vm33 = vcmask 130048
    %v34 = vsel %vm33, %v31, 0.0
    %35 = vadd.xlane.f32.xlu0 %v34
    %v36 = vpop.xlane.xlu0 %35
    %v37 = vsel %vm33, %v32, 0.0
    %38 = vadd.xlane.f32.xlu0 %v37
    %v39 = vpop.xlane.xlu0 %38
    %v40 = vadd.f32 %v29, %v36
    %v41 = vadd.f32 %v30, %v39
    %vm42 = vcmask 7168
    %43 = vst.msk [vmem:[#allocation2] sm:$0xff] %vm42, %v40
    %44 = vst.msk [vmem:[#allocation2 + $0x8] sm:$0xff] %vm42, %v41
    // Predicated region
    $region14: #{tpu_custom_call.1} parent=1 // pred_check
      %p45 = pneg %p22
    $region15: #{tpu_custom_call.1} parent=1 // pred_check_branch
      %47 = sbr.rel (%p45) target = $region17
    $region16: #{tpu_custom_call.1} parent=1 // pred_region
      %v48 = vld [vmem:[#allocation2] sm:$0xff]
      %v49 = vld [vmem:[#allocation2 + $0x8] sm:$0xff]
      %v50 = vrsqrt.pop %v48
      %v51 = vrsqrt.pop %v49
      %52 = vst.msk [vmem:[%s1] sm:$0xff] %vm42, %v50
      %53 = vst.msk [vmem:[%s1 + $0x8] sm:$0xff] %vm42, %v51
    $region17: #{tpu_custom_call.1} parent=1 // pred_fallthru
      _
    // Predicated region
    $region18: #{tpu_custom_call.1} parent=1 // pred_check
      _
    $region19: #{tpu_custom_call.1} parent=1 // pred_check_branch
      %55 = sbr.rel (0) target = $region21
    $region20: #{tpu_custom_call.1} parent=1 // pred_region
      _
    $region21: #{tpu_custom_call.1} parent=1 // pred_fallthru
      _
    // Predicated region
    $region22: #{tpu_custom_call.1} parent=1 // pred_check
      _
    $region23: #{tpu_custom_call.1} parent=1 // pred_check_branch
      %57 = sbr.rel (0) target = $region25
    $region24: #{tpu_custom_call.1} parent=1 // pred_region
      _
    $region25: #{tpu_custom_call.1} parent=1 // pred_fallthru
      _
    %58 = vsyncpa [#allocation4], 1

</llo_original>
